<compile_context>
chip_gen: v5e
topology: v5e:2x2
jax: 0.10.0
libtpu: 0.0.40
codegen_flags: <defaults>
</compile_context>

<pallas_src>
import numpy as np
import jax
import jax.numpy as jnp
from jax import lax
from jax.experimental import pallas as pl
from jax.experimental.pallas import tpu as pltpu

# ----- module-consistent hyper-parameters (small shapes) -----
NUM_LIDAR = 32        # num_lidar_features
NUM_NON_LIDAR = 4     # num_non_lidar_features
NUM_ACTIONS = 2
NFRAMES = 1
BATCH = 2

K1, S1, P1 = 5, 2, 6          # conv1: circular padding
K2, S2, P2 = 3, 2, 1          # conv2: zero padding
C1 = 32                       # conv out channels
L1_OUT = (NUM_LIDAR + 2 * P1 - K1) // S1 + 1        # 20
L2_OUT = (L1_OUT + 2 * P2 - K2) // S2 + 1           # 10
CONV_FLAT = C1 * L2_OUT                              # 320
H1 = 64
H2 = 64

# ----- packed-buffer layout constants -----
X_DIM = NFRAMES * NUM_LIDAR            # 32
NL_DIM = NUM_NON_LIDAR * NFRAMES       # 4
NL_PAD = 16                            # non-lidar padded to 16 (bf16 sublane tile)
ACT_W = X_DIM + NL_PAD                 # 48   activation slab width
OUT_PAD = 128                          # lane-dense output / padded FC width
BIAS_W = L1_OUT * C1                   # 640  bias slab width
BIAS_ROWS = 8                          # 5 used rows padded to 8 sublanes

# FC slab (bf16, width 128) row offsets — all multiples of 16 (bf16 sublane tile)
FC_WF1_OFF = 0                         # (320, 128): fc1 (flatten-perm folded), cols[:64]
FC_WF2A_OFF = FC_WF1_OFF + CONV_FLAT   # 320: (128, 128): fc2 feature block, [:64,:64]
FC_WF2B_OFF = FC_WF2A_OFF + OUT_PAD    # 448: (16, 128): fc2 non-lidar block, [:4,:64]
FC_WF3_OFF = FC_WF2B_OFF + NL_PAD      # 464: (128, 128): fc3, [:64,:2]
FC_ROWS = FC_WF3_OFF + OUT_PAD         # 592


# ----------------------------- fused kernel -----------------------------
def fused_kernel(act_ref, bias_ref, w1_ref, w2_ref, wfc_ref, out_ref):
    f32 = jnp.float32
    bf16 = jnp.bfloat16

    # activation slab: [0:32] lidar flat, [32:36] non_lidar flat, [36:48] zeros
    x = act_ref[:, 0:X_DIM]                       # (B, 32) f32
    nlp = act_ref[:, X_DIM:X_DIM + NL_PAD]        # (B, 16) f32 (cols 4..15 zero)

    # bias slab rows (lane-start 0 -> aligned slices)
    b1 = bias_ref[0:1, 0:L1_OUT * C1]             # (1, 640)
    b2 = bias_ref[1:2, 0:L2_OUT * C1]             # (1, 320)
    bf1 = bias_ref[2:3, 0:OUT_PAD]                # (1, 128) cols 64.. zero
    bf2 = bias_ref[3:4, 0:OUT_PAD]                # (1, 128) cols 64.. zero
    bf3 = bias_ref[4:5, 0:OUT_PAD]                # (1, 128) cols 2..  zero

    # conv1 (dense-expanded, circular pad folded) + bias + ReLU
    h = jnp.dot(x.astype(bf16), w1_ref[...], preferred_element_type=f32)
    h = jnp.maximum(h + b1, 0.0)                                  # (B, 640)

    # conv2 (dense-expanded, zero pad folded) + bias + ReLU
    h = jnp.dot(h.astype(bf16), w2_ref[...], preferred_element_type=f32)
    h = jnp.maximum(h + b2, 0.0)                                  # (B, 320)

    # fc1 (flatten permutation folded into rows; output padded to 128 lanes) + ReLU
    wf1 = wfc_ref[FC_WF1_OFF:FC_WF1_OFF + CONV_FLAT, :]           # (320, 128)
    h = jnp.dot(h.astype(bf16), wf1, preferred_element_type=f32)
    h = jnp.maximum(h + bf1, 0.0)                                 # (B, 128), cols 64.. = 0

    # fc2 on cat([h, non_lidar]) == h @ W2a + nl @ W2b, padded blocks keep zeros zero
    wf2a = wfc_ref[FC_WF2A_OFF:FC_WF2A_OFF + OUT_PAD, :]          # (128, 128)
    wf2b = wfc_ref[FC_WF2B_OFF:FC_WF2B_OFF + NL_PAD, :]           # (16, 128)
    g = jnp.dot(h.astype(bf16), wf2a, preferred_element_type=f32)
    g = g + jnp.dot(nlp.astype(bf16), wf2b, preferred_element_type=f32)
    g = jnp.maximum(g + bf2, 0.0)                                 # (B, 128), cols 64.. = 0

    # fc3 (padded to 128 output lanes -> unmasked lane-dense store)
    wf3 = wfc_ref[FC_WF3_OFF:FC_WF3_OFF + OUT_PAD, :]             # (128, 128)
    out_ref[...] = jnp.dot(g.astype(bf16), wf3, preferred_element_type=f32) + bf3


# ----------------------- one-time params preprocessing -----------------------
def prepare_params(params):
    """Expand convs to dense matmuls, fold the flatten permutation into fc1, split fc2
    for the concat, pack everything into 4 device buffers (bias f32, 3 bf16 weights)."""
    (w1, b1, w2, b2, wf1, bf1, wf2, bf2, wf3, bf3) = [np.asarray(p, np.float32) for p in params]

    # conv1 -> dense (NFRAMES*NUM_LIDAR, L1_OUT*C1); intermediate layout col = j*C1 + c
    W1d = np.zeros((NFRAMES * NUM_LIDAR, L1_OUT * C1), np.float32)
    for j in range(L1_OUT):
        for k in range(K1):
            i = (j * S1 + k - P1) % NUM_LIDAR
            for f in range(NFRAMES):
                W1d[f * NUM_LIDAR + i, j * C1:(j + 1) * C1] += w1[:, f, k]
    b1d = np.tile(b1, L1_OUT)                                     # (640,)

    # conv2 -> dense (L1_OUT*C1, L2_OUT*C1); output layout col = m*C1 + co
    W2d = np.zeros((L1_OUT * C1, L2_OUT * C1), np.float32)
    for m in range(L2_OUT):
        for k in range(K2):
            j = m * S2 + k - P2
            if 0 <= j < L1_OUT:
                W2d[j * C1:(j + 1) * C1, m * C1:(m + 1) * C1] += w2[:, :, k].T
    b2d = np.tile(b2, L2_OUT)                                     # (320,)

    # fc1 with the PyTorch channel-major flatten (col co*L2_OUT + m) folded in:
    # rows ordered m*C1 + co to match the kernel's conv2 output layout.
    wf1_3d = wf1.reshape(H1, C1, L2_OUT)                          # [h, co, m]
    Wf1d = np.transpose(wf1_3d, (2, 1, 0)).reshape(L2_OUT * C1, H1)

    Wf2a = wf2[:, :H1].T                                          # (64, 64)
    Wf2b = wf2[:, H1:].T                                          # (4, 64)
    Wf3 = wf3.T                                                   # (64, 2)

    # FC slab: width 128, bf16, zero-padded blocks (zeros keep padded lanes at zero).
    fc_slab = np.zeros((FC_ROWS, OUT_PAD), np.float32)
    fc_slab[FC_WF1_OFF:FC_WF1_OFF + CONV_FLAT, :H1] = Wf1d
    fc_slab[FC_WF2A_OFF:FC_WF2A_OFF + H1, :H2] = Wf2a
    fc_slab[FC_WF2B_OFF:FC_WF2B_OFF + NL_DIM, :H2] = Wf2b
    fc_slab[FC_WF3_OFF:FC_WF3_OFF + H2, :NUM_ACTIONS] = Wf3

    # Bias slab: one f32 buffer, one row per layer (lane offsets all start at 0).
    bias = np.zeros((BIAS_ROWS, BIAS_W), np.float32)
    bias[0, :L1_OUT * C1] = b1d
    bias[1, :L2_OUT * C1] = b2d
    bias[2, :H1] = bf1
    bias[3, :H2] = bf2
    bias[4, :NUM_ACTIONS] = bf3

    return (jnp.asarray(bias, jnp.float32),
            jnp.asarray(W1d, jnp.bfloat16),
            jnp.asarray(W2d, jnp.bfloat16),
            jnp.asarray(fc_slab, jnp.bfloat16))


# ------------------------------- forward -------------------------------
@jax.jit
def cnn_forward(lidar, non_lidar, prepped):
    B = lidar.shape[0]
    x_flat = lidar.reshape(B, X_DIM).astype(jnp.float32)
    nl_flat = non_lidar.reshape(B, NL_DIM).astype(jnp.float32)
    # One activation slab: [lidar | non_lidar | zero pad to 48 lanes]
    act = jnp.concatenate(
        [x_flat, nl_flat, jnp.zeros((B, NL_PAD - NL_DIM), jnp.float32)], axis=-1)

    vmem = pl.BlockSpec(memory_space=pltpu.MemorySpace.VMEM)
    out = pl.pallas_call(
        fused_kernel,
        out_shape=jax.ShapeDtypeStruct((B, OUT_PAD), jnp.float32),
        in_specs=[vmem] * 5,
        out_specs=vmem,
    )(act, *prepped)
    return out[:, :NUM_ACTIONS]


# ------------------------------- reference -------------------------------
def reference_forward(lidar, non_lidar, params):
    """Pure-JAX reference mirroring the PyTorch module exactly (f32 throughout)."""
    (w1, b1, w2, b2, wf1, bf1, wf2, bf2, wf3, bf3) = params
    x = jnp.pad(lidar, ((0, 0), (0, 0), (P1, P1)), mode='wrap')      # circular pad
    dn1 = lax.conv_dimension_numbers(x.shape, w1.shape, ('NCH', 'OIH', 'NCH'))
    f = lax.conv_general_dilated(x, w1, window_strides=(S1,), padding='VALID',
                                 dimension_numbers=dn1)
    f = jax.nn.relu(f + b1[None, :, None])
    dn2 = lax.conv_dimension_numbers(f.shape, w2.shape, ('NCH', 'OIH', 'NCH'))
    f = lax.conv_general_dilated(f, w2, window_strides=(S2,), padding=[(P2, P2)],
                                 dimension_numbers=dn2)
    f = jax.nn.relu(f + b2[None, :, None])
    f = f.reshape(f.shape[0], -1)
    f = jax.nn.relu(f @ wf1.T + bf1)
    f = jnp.concatenate([f, non_lidar.reshape(non_lidar.shape[0], -1)], axis=-1)
    f = jax.nn.relu(f @ wf2.T + bf2)
    return f @ wf3.T + bf3


def init_params(key):
    # Deterministic synthetic weights with the module's shapes (not a checkpoint).
    ks = jax.random.split(key, 10)
    s = 0.1
    w1 = s * jax.random.normal(ks[0], (C1, NFRAMES, K1), jnp.float32)
    b1 = s * jax.random.normal(ks[1], (C1,), jnp.float32)
    w2 = s * jax.random.normal(ks[2], (C1, C1, K2), jnp.float32)
    b2 = s * jax.random.normal(ks[3], (C1,), jnp.float32)
    wf1 = s * jax.random.normal(ks[4], (H1, CONV_FLAT), jnp.float32)
    bf1 = s * jax.random.normal(ks[5], (H1,), jnp.float32)
    wf2 = s * jax.random.normal(ks[6], (H2, H1 + NUM_NON_LIDAR * NFRAMES), jnp.float32)
    bf2 = s * jax.random.normal(ks[7], (H2,), jnp.float32)
    wf3 = s * jax.random.normal(ks[8], (NUM_ACTIONS, H2), jnp.float32)
    bf3 = s * jax.random.normal(ks[9], (NUM_ACTIONS,), jnp.float32)
    return (w1, b1, w2, b2, wf1, bf1, wf2, bf2, wf3, bf3)


if __name__ == "__main__":
    key = jax.random.PRNGKey(0)
    kp, kl, kn = jax.random.split(key, 3)
    params = init_params(kp)
    lidar = jax.random.normal(kl, (BATCH, NFRAMES, NUM_LIDAR), jnp.float32)
    non_lidar = jax.random.normal(kn, (BATCH, NFRAMES, NUM_NON_LIDAR), jnp.float32)

    prepped = prepare_params(params)          # one-time weight expansion / packing

    out = cnn_forward(lidar, non_lidar, prepped)
    out = jax.block_until_ready(out)

    ref = reference_forward(lidar, non_lidar, params)
    # bf16 weights -> loosened tolerance vs the f32 reference (per perf review).
    if not np.allclose(np.asarray(out), np.asarray(ref), atol=3e-2, rtol=3e-2):
        raise AssertionError(
            f"Pallas output mismatch vs reference:\n{np.asarray(out)}\nvs\n{np.asarray(ref)}")
    print("KERNEL_OK")
</pallas_src>

<mosaic_0001>
module attributes {stable_mosaic.version = 11 : i64} {
  func.func @fused_kernel(%arg0: memref<2x48xf32, #tpu.memory_space<vmem>>, %arg1: memref<8x640xf32, #tpu.memory_space<vmem>>, %arg2: memref<32x640xbf16, #tpu.memory_space<vmem>>, %arg3: memref<640x320xbf16, #tpu.memory_space<vmem>>, %arg4: memref<592x128xbf16, #tpu.memory_space<vmem>>, %arg5: memref<2x128xf32, #tpu.memory_space<vmem>>) attributes {dimension_semantics = [], scalar_prefetch = 0 : i64, scratch_operands = 0 : i64, tpu.core_type = #tpu.core_type<tc>} {
    %c0 = arith.constant 0 : index
    %c0_0 = arith.constant 0 : index
    %0 = vector.load %arg0[%c0, %c0_0] : memref<2x48xf32, #tpu.memory_space<vmem>>, vector<2x32xf32>
    %c0_1 = arith.constant 0 : index
    %c32 = arith.constant 32 : index
    %1 = vector.load %arg0[%c0_1, %c32] : memref<2x48xf32, #tpu.memory_space<vmem>>, vector<2x16xf32>
    %c0_2 = arith.constant 0 : index
    %c0_3 = arith.constant 0 : index
    %2 = vector.load %arg1[%c0_2, %c0_3] : memref<8x640xf32, #tpu.memory_space<vmem>>, vector<1x640xf32>
    %c1 = arith.constant 1 : index
    %c0_4 = arith.constant 0 : index
    %3 = vector.load %arg1[%c1, %c0_4] : memref<8x640xf32, #tpu.memory_space<vmem>>, vector<1x320xf32>
    %c2 = arith.constant 2 : index
    %c0_5 = arith.constant 0 : index
    %4 = vector.load %arg1[%c2, %c0_5] : memref<8x640xf32, #tpu.memory_space<vmem>>, vector<1x128xf32>
    %c3 = arith.constant 3 : index
    %c0_6 = arith.constant 0 : index
    %5 = vector.load %arg1[%c3, %c0_6] : memref<8x640xf32, #tpu.memory_space<vmem>>, vector<1x128xf32>
    %c4 = arith.constant 4 : index
    %c0_7 = arith.constant 0 : index
    %6 = vector.load %arg1[%c4, %c0_7] : memref<8x640xf32, #tpu.memory_space<vmem>>, vector<1x128xf32>
    %7 = arith.truncf %0 : vector<2x32xf32> to vector<2x32xbf16>
    %c0_8 = arith.constant 0 : index
    %c0_9 = arith.constant 0 : index
    %8 = vector.load %arg2[%c0_8, %c0_9] : memref<32x640xbf16, #tpu.memory_space<vmem>>, vector<32x640xbf16>
    %cst = arith.constant dense<0.000000e+00> : vector<2x640xf32>
    %9 = tpu.matmul %7, %8, %cst {dimension_numbers = #tpu.dot_dimension_numbers<[1], [0], [0], [1], [0, 0, 1, 1], [], []>} : vector<2x32xbf16>, vector<32x640xbf16>, vector<2x640xf32> -> vector<2x640xf32>
    %10 = vector.broadcast %2 : vector<1x640xf32> to vector<2x640xf32>
    %11 = arith.addf %9, %10 : vector<2x640xf32>
    %cst_10 = arith.constant 0.000000e+00 : f32
    %12 = vector.broadcast %cst_10 : f32 to vector<2x640xf32>
    %13 = arith.maximumf %11, %12 : vector<2x640xf32>
    %14 = arith.truncf %13 : vector<2x640xf32> to vector<2x640xbf16>
    %c0_11 = arith.constant 0 : index
    %c0_12 = arith.constant 0 : index
    %15 = vector.load %arg3[%c0_11, %c0_12] : memref<640x320xbf16, #tpu.memory_space<vmem>>, vector<640x320xbf16>
    %cst_13 = arith.constant dense<0.000000e+00> : vector<2x320xf32>
    %16 = tpu.matmul %14, %15, %cst_13 {dimension_numbers = #tpu.dot_dimension_numbers<[1], [0], [0], [1], [0, 0, 1, 1], [], []>} : vector<2x640xbf16>, vector<640x320xbf16>, vector<2x320xf32> -> vector<2x320xf32>
    %17 = vector.broadcast %3 : vector<1x320xf32> to vector<2x320xf32>
    %18 = arith.addf %16, %17 : vector<2x320xf32>
    %cst_14 = arith.constant 0.000000e+00 : f32
    %19 = vector.broadcast %cst_14 : f32 to vector<2x320xf32>
    %20 = arith.maximumf %18, %19 : vector<2x320xf32>
    %c0_15 = arith.constant 0 : index
    %c0_16 = arith.constant 0 : index
    %21 = vector.load %arg4[%c0_15, %c0_16] : memref<592x128xbf16, #tpu.memory_space<vmem>>, vector<320x128xbf16>
    %22 = arith.truncf %20 : vector<2x320xf32> to vector<2x320xbf16>
    %cst_17 = arith.constant dense<0.000000e+00> : vector<2x128xf32>
    %23 = tpu.matmul %22, %21, %cst_17 {dimension_numbers = #tpu.dot_dimension_numbers<[1], [0], [0], [1], [0, 0, 1, 1], [], []>} : vector<2x320xbf16>, vector<320x128xbf16>, vector<2x128xf32> -> vector<2x128xf32>
    %24 = vector.broadcast %4 : vector<1x128xf32> to vector<2x128xf32>
    %25 = arith.addf %23, %24 : vector<2x128xf32>
    %cst_18 = arith.constant 0.000000e+00 : f32
    %26 = vector.broadcast %cst_18 : f32 to vector<2x128xf32>
    %27 = arith.maximumf %25, %26 : vector<2x128xf32>
    %c320 = arith.constant 320 : index
    %c0_19 = arith.constant 0 : index
    %28 = vector.load %arg4[%c320, %c0_19] : memref<592x128xbf16, #tpu.memory_space<vmem>>, vector<128x128xbf16>
    %c448 = arith.constant 448 : index
    %c0_20 = arith.constant 0 : index
    %29 = vector.load %arg4[%c448, %c0_20] : memref<592x128xbf16, #tpu.memory_space<vmem>>, vector<16x128xbf16>
    %30 = arith.truncf %27 : vector<2x128xf32> to vector<2x128xbf16>
    %cst_21 = arith.constant dense<0.000000e+00> : vector<2x128xf32>
    %31 = tpu.matmul %30, %28, %cst_21 {dimension_numbers = #tpu.dot_dimension_numbers<[1], [0], [0], [1], [0, 0, 1, 1], [], []>} : vector<2x128xbf16>, vector<128x128xbf16>, vector<2x128xf32> -> vector<2x128xf32>
    %32 = arith.truncf %1 : vector<2x16xf32> to vector<2x16xbf16>
    %cst_22 = arith.constant dense<0.000000e+00> : vector<2x128xf32>
    %33 = tpu.matmul %32, %29, %cst_22 {dimension_numbers = #tpu.dot_dimension_numbers<[1], [0], [0], [1], [0, 0, 1, 1], [], []>} : vector<2x16xbf16>, vector<16x128xbf16>, vector<2x128xf32> -> vector<2x128xf32>
    %34 = arith.addf %31, %33 : vector<2x128xf32>
    %35 = vector.broadcast %5 : vector<1x128xf32> to vector<2x128xf32>
    %36 = arith.addf %34, %35 : vector<2x128xf32>
    %cst_23 = arith.constant 0.000000e+00 : f32
    %37 = vector.broadcast %cst_23 : f32 to vector<2x128xf32>
    %38 = arith.maximumf %36, %37 : vector<2x128xf32>
    %c464 = arith.constant 464 : index
    %c0_24 = arith.constant 0 : index
    %39 = vector.load %arg4[%c464, %c0_24] : memref<592x128xbf16, #tpu.memory_space<vmem>>, vector<128x128xbf16>
    %40 = arith.truncf %38 : vector<2x128xf32> to vector<2x128xbf16>
    %cst_25 = arith.constant dense<0.000000e+00> : vector<2x128xf32>
    %41 = tpu.matmul %40, %39, %cst_25 {dimension_numbers = #tpu.dot_dimension_numbers<[1], [0], [0], [1], [0, 0, 1, 1], [], []>} : vector<2x128xbf16>, vector<128x128xbf16>, vector<2x128xf32> -> vector<2x128xf32>
    %42 = vector.broadcast %6 : vector<1x128xf32> to vector<2x128xf32>
    %43 = arith.addf %41, %42 : vector<2x128xf32>
    %c0_26 = arith.constant 0 : index
    %c0_27 = arith.constant 0 : index
    %44 = vector.load %arg5[%c0_26, %c0_27] : memref<2x128xf32, #tpu.memory_space<vmem>>, vector<2x128xf32>
    tpu.vector_store %arg5[%c0_26, %c0_27], %43 {strides = array<i32>} : memref<2x128xf32, #tpu.memory_space<vmem>>, vector<2x128xf32>,
    return
  }
}

</mosaic_0001>

<llo_original>
// kernel: cnn_forward.1
$region0: #{cnn_forward.1}
  #allocation0 [shape = 'u32[]', space=smem, size = 0x4, offset = 0x4, fixed_abs, tag = 'smem constant byte address 0x4 - core index']
  #allocation1 [shape = 'u32[72,128]{1,0:T(1,128)}', space=vmem, size = 0x9000, scoped, tag = 'internal scratch']
  %s0 = inlined_call_operand.vmem [shape: f32[2,48], index: 0, kind: input, shape index: {}]
  %s1 = inlined_call_operand.vmem [shape: f32[8,640], index: 1, kind: input, shape index: {}]
  %s2 = inlined_call_operand.vmem [shape: bf16[32,640], index: 2, kind: input, shape index: {}]
  %s3 = inlined_call_operand.vmem [shape: bf16[640,320], index: 3, kind: input, shape index: {}]
  %s4 = inlined_call_operand.vmem [shape: bf16[592,128], index: 4, kind: input, shape index: {}]
  %s5 = inlined_call_operand.hbm [shape: f32[2,128], index: 5, kind: output, shape index: {}]
  %s6 = sld [smem:[#allocation0]]
  $region30: #{cnn_forward.1} parent=0
    _
  %s8 = ssub.s32 1, %s6
  %s9 = scalar_select 0, %s8, %s6
  $region1: #{cnn_forward.1} parent=0
    #allocation2 [shape = 'u8[1024]{0}', space=vmem, size = 0x400, scoped, tag = 'output window, operand 0, single buffered']
    #allocation3 [shape = 's32[1]{0}', space=sflag, size = 0x4, scoped, tag = 'scoped memory for cnn_forward.1']
    %10 = vsyncpa [#allocation3], 0
    // Predicated region
    $region2: #{cnn_forward.1} parent=1 // pred_check
      _
    $region3: #{cnn_forward.1} parent=1 // pred_check_branch
      %12 = sbr.rel (0) target = $region5
    $region4: #{cnn_forward.1} parent=1 // pred_region
      _
    $region5: #{cnn_forward.1} parent=1 // pred_fallthru
      _
    // Predicated region
    $region6: #{cnn_forward.1} parent=1 // pred_check
      _
    $region7: #{cnn_forward.1} parent=1 // pred_check_branch
      %14 = sbr.rel (0) target = $region9
    $region8: #{cnn_forward.1} parent=1 // pred_region
      _
    $region9: #{cnn_forward.1} parent=1 // pred_fallthru
      _
    // Predicated region
    $region10: #{cnn_forward.1} parent=1 // pred_check
      _
    $region11: #{cnn_forward.1} parent=1 // pred_check_branch
      %16 = sbr.rel (0) target = $region13
    $region12: #{cnn_forward.1} parent=1 // pred_region
      _
    $region13: #{cnn_forward.1} parent=1 // pred_fallthru
      _
    // Predicated region
    $region14: #{cnn_forward.1} parent=1 // pred_check
      _
    $region15: #{cnn_forward.1} parent=1 // pred_check_branch
      %18 = sbr.rel (0) target = $region17
    $region16: #{cnn_forward.1} parent=1 // pred_region
      _
    $region17: #{cnn_forward.1} parent=1 // pred_fallthru
      _
    // Predicated region
    $region18: #{cnn_forward.1} parent=1 // pred_check
      _
    $region19: #{cnn_forward.1} parent=1 // pred_check_branch
      %20 = sbr.rel (0) target = $region21
    $region20: #{cnn_forward.1} parent=1 // pred_region
      _
    $region21: #{cnn_forward.1} parent=1 // pred_fallthru
      _
    %v22 = vld [vmem:[%s0] sm:$0x3]
    %v23 = vld [vmem:[%s1] ss:$8 sm:$0xf]
    %v24 = vld [vmem:[%s1] ss:$8 sm:$0x10]
    %v25 = vor.u32 %v23, %v24
    %s26 = scalar_lea.vmem %s1, 1
    %v27 = vld [vmem:[%s26] ss:$8 sm:$0x7]
    %v28 = vld [vmem:[%s1 + $0x2] ss:$0 sm:$0xff]
    %v29 = vld [vmem:[%s1 + $0x3] ss:$0 sm:$0xff]
    %v30 = vld [vmem:[%s1 + $0x4] ss:$0 sm:$0xff]
    %v31 = vpack.c.bf16 %v22, %v22
    %v32 = vld [vmem:[%s2] sm:$0xff]
    %v33 = vld [vmem:[%s2 + $0x8] sm:$0xff]
    %v34 = vld [vmem:[%s2 + $0x10] sm:$0xf]
    %v35 = vld [vmem:[%s2 + $0x14] sm:$0xff]
    %v36 = vld [vmem:[%s2 + $0x1c] sm:$0xff]
    %v37 = vld [vmem:[%s2 + $0x24] sm:$0xf]
    %v38 = vld [vmem:[%s2 + $0x28] sm:$0xff]
    %v39 = vld [vmem:[%s2 + $0x30] sm:$0xff]
    %v40 = vld [vmem:[%s2 + $0x38] sm:$0xf]
    %v41 = vld [vmem:[%s2 + $0x3c] sm:$0xff]
    %v42 = vld [vmem:[%s2 + $0x44] sm:$0xff]
    %v43 = vld [vmem:[%s2 + $0x4c] sm:$0xf]
    %v45 = vperm.slane %v25, 0
    %v46 = vperm.slane %v25, 1
    %v47 = vperm.slane %v25, 2
    %v48 = vperm.slane %v25, 3
    %v49 = vperm.slane %v25, 4
    %v67 = vunpack.c.l.b16 %v32
    %v68 = vunpack.c.h.b16 %v32
    %v69 = vunpack.c.l.b16 %v33
    %v70 = vunpack.c.h.b16 %v33
    %v71 = vunpack.c.l.b16 %v34
    %v72 = vunpack.c.l.b16 %v35
    %v73 = vunpack.c.h.b16 %v35
    %v74 = vunpack.c.l.b16 %v36
    %v75 = vunpack.c.h.b16 %v36
    %v76 = vunpack.c.l.b16 %v37
    %v77 = vunpack.c.l.b16 %v38
    %v78 = vunpack.c.h.b16 %v38
    %v79 = vunpack.c.l.b16 %v39
    %v80 = vunpack.c.h.b16 %v39
    %v81 = vunpack.c.l.b16 %v40
    %v82 = vunpack.c.l.b16 %v41
    %v83 = vunpack.c.h.b16 %v41
    %v84 = vunpack.c.l.b16 %v42
    %v85 = vunpack.c.h.b16 %v42
    %v86 = vunpack.c.l.b16 %v43
    %v87 = vpack.c.b16 %v72, %v67
    %v88 = vpack.c.b16 %v73, %v68
    %v89 = vpack.c.b16 %v74, %v69
    %v90 = vpack.c.b16 %v75, %v70
    %v91 = vpack.c.b16 %v76, %v71
    %v92 = vpack.c.b16 %v82, %v77
    %v93 = vpack.c.b16 %v83, %v78
    %v94 = vpack.c.b16 %v84, %v79
    %v95 = vpack.c.b16 %v85, %v80
    %v96 = vpack.c.b16 %v86, %v81
    %vm107 = vcmask 261120
    %v109 = vsel %vm107, %v31, 0
    %111 = vmatpush.bf16.msra.mxu0 0
    %112 = vmatpush.bf16.msra.mxu0 0
    %113 = vmatpush.bf16.msra.mxu0 0
    %114 = vmatpush.bf16.msra.mxu0 0
    %115 = vmatpush.bf16.msra.mxu0 0
    %116 = vmatpush.bf16.msra.mxu0 0
    %117 = vmatpush.bf16.msra.mxu0 %v92
    %118 = vmatpush.bf16.msra.mxu0 %v87
    %119 = vmatmul.bf16.gmra.mxu0 %v109
    %v120 = vpop.f32.mrf.mxu0
    %v121 = vadd.f32 %v45, %v120
    %v122 = vpop.f32.mrf.mxu0
    %123 = vdwg.mxu0
    %124 = vmatpush.bf16.msra.mxu0 0
    %125 = vmatpush.bf16.msra.mxu0 0
    %126 = vmatpush.bf16.msra.mxu0 0
    %127 = vmatpush.bf16.msra.mxu0 0
    %128 = vmatpush.bf16.msra.mxu0 0
    %129 = vmatpush.bf16.msra.mxu0 0
    %130 = vmatpush.bf16.msra.mxu0 %v93
    %131 = vmatpush.bf16.msra.mxu0 %v88
    %132 = vmatmul.bf16.gmra.mxu0 %v109
    %v133 = vpop.f32.mrf.mxu0
    %v134 = vadd.f32 %v46, %v133
    %v135 = vpop.f32.mrf.mxu0
    %136 = vdwg.mxu0
    %137 = vmatpush.bf16.msra.mxu0 0
    %138 = vmatpush.bf16.msra.mxu0 0
    %139 = vmatpush.bf16.msra.mxu0 0
    %140 = vmatpush.bf16.msra.mxu0 0
    %141 = vmatpush.bf16.msra.mxu0 0
    %142 = vmatpush.bf16.msra.mxu0 0
    %143 = vmatpush.bf16.msra.mxu0 %v94
    %144 = vmatpush.bf16.msra.mxu0 %v89
    %145 = vmatmul.bf16.gmra.mxu0 %v109
    %v146 = vpop.f32.mrf.mxu0
    %v147 = vadd.f32 %v47, %v146
    %v148 = vpop.f32.mrf.mxu0
    %149 = vdwg.mxu0
    %150 = vmatpush.bf16.msra.mxu0 0
    %151 = vmatpush.bf16.msra.mxu0 0
    %152 = vmatpush.bf16.msra.mxu0 0
    %153 = vmatpush.bf16.msra.mxu0 0
    %154 = vmatpush.bf16.msra.mxu0 0
    %155 = vmatpush.bf16.msra.mxu0 0
    %156 = vmatpush.bf16.msra.mxu0 %v95
    %157 = vmatpush.bf16.msra.mxu0 %v90
    %158 = vmatmul.bf16.gmra.mxu0 %v109
    %v159 = vpop.f32.mrf.mxu0
    %v160 = vadd.f32 %v48, %v159
    %v161 = vpop.f32.mrf.mxu0
    %162 = vdwg.mxu0
    %163 = vmatpush.bf16.msra.mxu0 0
    %164 = vmatpush.bf16.msra.mxu0 0
    %165 = vmatpush.bf16.msra.mxu0 0
    %166 = vmatpush.bf16.msra.mxu0 0
    %167 = vmatpush.bf16.msra.mxu0 0
    %168 = vmatpush.bf16.msra.mxu0 0
    %169 = vmatpush.bf16.msra.mxu0 %v96
    %170 = vmatpush.bf16.msra.mxu0 %v91
    %171 = vmatmul.bf16.gmra.mxu0 %v109
    %v172 = vpop.f32.mrf.mxu0
    %v173 = vadd.f32 %v49, %v172
    %v174 = vpop.f32.mrf.mxu0
    %175 = vdwg.mxu0
    %v176 = vmax.f32 %v121, 0.0
    %v177 = vmax.f32 %v134, 0.0
    %v178 = vmax.f32 %v147, 0.0
    %v179 = vmax.f32 %v160, 0.0
    %v180 = vmax.f32 %v173, 0.0
    %v181 = vpack.c.bf16 %v176, %v176
    %v182 = vpack.c.bf16 %v177, %v177
    %v183 = vpack.c.bf16 %v178, %v178
    %v184 = vpack.c.bf16 %v179, %v179
    %v185 = vpack.c.bf16 %v180, %v180
    %v186 = vld [vmem:[%s3] sm:$0xff]
    %v187 = vld [vmem:[%s3 + $0x8] sm:$0xf]
    %v188 = vld [vmem:[%s3 + $0xc] sm:$0xff]
    %v189 = vld [vmem:[%s3 + $0x14] sm:$0xf]
    %v190 = vld [vmem:[%s3 + $0x18] sm:$0xff]
    %v191 = vld [vmem:[%s3 + $0x20] sm:$0xf]
    %v192 = vld [vmem:[%s3 + $0x24] sm:$0xff]
    %v193 = vld [vmem:[%s3 + $0x2c] sm:$0xf]
    %v194 = vld [vmem:[%s3 + $0x30] sm:$0xff]
    %v195 = vld [vmem:[%s3 + $0x38] sm:$0xf]
    %v196 = vld [vmem:[%s3 + $0x3c] sm:$0xff]
    %v197 = vld [vmem:[%s3 + $0x44] sm:$0xf]
    %v198 = vld [vmem:[%s3 + $0x48] sm:$0xff]
    %v199 = vld [vmem:[%s3 + $0x50] sm:$0xf]
    %v200 = vld [vmem:[%s3 + $0x54] sm:$0xff]
    %v201 = vld [vmem:[%s3 + $0x5c] sm:$0xf]
    %v202 = vld [vmem:[%s3 + $0x60] sm:$0xff]
    %v203 = vld [vmem:[%s3 + $0x68] sm:$0xf]
    %v204 = vld [vmem:[%s3 + $0x6c] sm:$0xff]
    %v205 = vld [vmem:[%s3 + $0x74] sm:$0xf]
    %v206 = vld [vmem:[%s3 + $0x78] sm:$0xff]
    %v207 = vld [vmem:[%s3 + $0x80] sm:$0xf]
    %v208 = vld [vmem:[%s3 + $0x84] sm:$0xff]
    %v209 = vld [vmem:[%s3 + $0x8c] sm:$0xf]
    %v210 = vld [vmem:[%s3 + $0x90] sm:$0xff]
    %v211 = vld [vmem:[%s3 + $0x98] sm:$0xf]
    %v212 = vld [vmem:[%s3 + $0x9c] sm:$0xff]
    %v213 = vld [vmem:[%s3 + $0xa4] sm:$0xf]
    %v214 = vld [vmem:[%s3 + $0xa8] sm:$0xff]
    %v215 = vld [vmem:[%s3 + $0xb0] sm:$0xf]
    %v216 = vld [vmem:[%s3 + $0xb4] sm:$0xff]
    %v217 = vld [vmem:[%s3 + $0xbc] sm:$0xf]
    %v218 = vld [vmem:[%s3 + $0xc0] sm:$0xff]
    %v219 = vld [vmem:[%s3 + $0xc8] sm:$0xf]
    %v220 = vld [vmem:[%s3 + $0xcc] sm:$0xff]
    %v221 = vld [vmem:[%s3 + $0xd4] sm:$0xf]
    %v222 = vld [vmem:[%s3 + $0xd8] sm:$0xff]
    %v223 = vld [vmem:[%s3 + $0xe0] sm:$0xf]
    %v224 = vld [vmem:[%s3 + $0xe4] sm:$0xff]
    %v225 = vld [vmem:[%s3 + $0xec] sm:$0xf]
    %v226 = vld [vmem:[%s3 + $0xf0] sm:$0xff]
    %v227 = vld [vmem:[%s3 + $0xf8] sm:$0xf]
    %v228 = vld [vmem:[%s3 + $0xfc] sm:$0xff]
    %v229 = vld [vmem:[%s3 + $0x104] sm:$0xf]
    %v230 = vld [vmem:[%s3 + $0x108] sm:$0xff]
    %v231 = vld [vmem:[%s3 + $0x110] sm:$0xf]
    %v232 = vld [vmem:[%s3 + $0x114] sm:$0xff]
    %v233 = vld [vmem:[%s3 + $0x11c] sm:$0xf]
    %v234 = vld [vmem:[%s3 + $0x120] sm:$0xff]
    %v235 = vld [vmem:[%s3 + $0x128] sm:$0xf]
    %v236 = vld [vmem:[%s3 + $0x12c] sm:$0xff]
    %v237 = vld [vmem:[%s3 + $0x134] sm:$0xf]
    %v238 = vld [vmem:[%s3 + $0x138] sm:$0xff]
    %v239 = vld [vmem:[%s3 + $0x140] sm:$0xf]
    %v240 = vld [vmem:[%s3 + $0x144] sm:$0xff]
    %v241 = vld [vmem:[%s3 + $0x14c] sm:$0xf]
    %v242 = vld [vmem:[%s3 + $0x150] sm:$0xff]
    %v243 = vld [vmem:[%s3 + $0x158] sm:$0xf]
    %v244 = vld [vmem:[%s3 + $0x15c] sm:$0xff]
    %v245 = vld [vmem:[%s3 + $0x164] sm:$0xf]
    %v246 = vld [vmem:[%s3 + $0x168] sm:$0xff]
    %v247 = vld [vmem:[%s3 + $0x170] sm:$0xf]
    %v248 = vld [vmem:[%s3 + $0x174] sm:$0xff]
    %v249 = vld [vmem:[%s3 + $0x17c] sm:$0xf]
    %v250 = vld [vmem:[%s3 + $0x180] sm:$0xff]
    %v251 = vld [vmem:[%s3 + $0x188] sm:$0xf]
    %v252 = vld [vmem:[%s3 + $0x18c] sm:$0xff]
    %v253 = vld [vmem:[%s3 + $0x194] sm:$0xf]
    %v254 = vld [vmem:[%s3 + $0x198] sm:$0xff]
    %v255 = vld [vmem:[%s3 + $0x1a0] sm:$0xf]
    %v256 = vld [vmem:[%s3 + $0x1a4] sm:$0xff]
    %v257 = vld [vmem:[%s3 + $0x1ac] sm:$0xf]
    %v258 = vld [vmem:[%s3 + $0x1b0] sm:$0xff]
    %v259 = vld [vmem:[%s3 + $0x1b8] sm:$0xf]
    %v260 = vld [vmem:[%s3 + $0x1bc] sm:$0xff]
    %v261 = vld [vmem:[%s3 + $0x1c4] sm:$0xf]
    %v262 = vld [vmem:[%s3 + $0x1c8] sm:$0xff]
    %v263 = vld [vmem:[%s3 + $0x1d0] sm:$0xf]
    %v264 = vld [vmem:[%s3 + $0x1d4] sm:$0xff]
    %v265 = vld [vmem:[%s3 + $0x1dc] sm:$0xf]
    %v266 = vld [vmem:[%s3 + $0x1e0] sm:$0xff]
    %v267 = vld [vmem:[%s3 + $0x1e8] sm:$0xf]
    %v268 = vld [vmem:[%s3 + $0x1ec] sm:$0xff]
    %v269 = vld [vmem:[%s3 + $0x1f4] sm:$0xf]
    %v270 = vld [vmem:[%s3 + $0x1f8] sm:$0xff]
    %v271 = vld [vmem:[%s3 + $0x200] sm:$0xf]
    %v272 = vld [vmem:[%s3 + $0x204] sm:$0xff]
    %v273 = vld [vmem:[%s3 + $0x20c] sm:$0xf]
    %v274 = vld [vmem:[%s3 + $0x210] sm:$0xff]
    %v275 = vld [vmem:[%s3 + $0x218] sm:$0xf]
    %v276 = vld [vmem:[%s3 + $0x21c] sm:$0xff]
    %v277 = vld [vmem:[%s3 + $0x224] sm:$0xf]
    %v278 = vld [vmem:[%s3 + $0x228] sm:$0xff]
    %v279 = vld [vmem:[%s3 + $0x230] sm:$0xf]
    %v280 = vld [vmem:[%s3 + $0x234] sm:$0xff]
    %v281 = vld [vmem:[%s3 + $0x23c] sm:$0xf]
    %v282 = vld [vmem:[%s3 + $0x240] sm:$0xff]
    %v283 = vld [vmem:[%s3 + $0x248] sm:$0xf]
    %v284 = vld [vmem:[%s3 + $0x24c] sm:$0xff]
    %v285 = vld [vmem:[%s3 + $0x254] sm:$0xf]
    %v286 = vld [vmem:[%s3 + $0x258] sm:$0xff]
    %v287 = vld [vmem:[%s3 + $0x260] sm:$0xf]
    %v288 = vld [vmem:[%s3 + $0x264] sm:$0xff]
    %v289 = vld [vmem:[%s3 + $0x26c] sm:$0xf]
    %v290 = vld [vmem:[%s3 + $0x270] sm:$0xff]
    %v291 = vld [vmem:[%s3 + $0x278] sm:$0xf]
    %v292 = vld [vmem:[%s3 + $0x27c] sm:$0xff]
    %v293 = vld [vmem:[%s3 + $0x284] sm:$0xf]
    %v294 = vld [vmem:[%s3 + $0x288] sm:$0xff]
    %v295 = vld [vmem:[%s3 + $0x290] sm:$0xf]
    %v296 = vld [vmem:[%s3 + $0x294] sm:$0xff]
    %v297 = vld [vmem:[%s3 + $0x29c] sm:$0xf]
    %v298 = vld [vmem:[%s3 + $0x2a0] sm:$0xff]
    %v299 = vld [vmem:[%s3 + $0x2a8] sm:$0xf]
    %v300 = vld [vmem:[%s3 + $0x2ac] sm:$0xff]
    %v301 = vld [vmem:[%s3 + $0x2b4] sm:$0xf]
    %v302 = vld [vmem:[%s3 + $0x2b8] sm:$0xff]
    %v303 = vld [vmem:[%s3 + $0x2c0] sm:$0xf]
    %v304 = vld [vmem:[%s3 + $0x2c4] sm:$0xff]
    %v305 = vld [vmem:[%s3 + $0x2cc] sm:$0xf]
    %v306 = vld [vmem:[%s3 + $0x2d0] sm:$0xff]
    %v307 = vld [vmem:[%s3 + $0x2d8] sm:$0xf]
    %v308 = vld [vmem:[%s3 + $0x2dc] sm:$0xff]
    %v309 = vld [vmem:[%s3 + $0x2e4] sm:$0xf]
    %v310 = vld [vmem:[%s3 + $0x2e8] sm:$0xff]
    %v311 = vld [vmem:[%s3 + $0x2f0] sm:$0xf]
    %v312 = vld [vmem:[%s3 + $0x2f4] sm:$0xff]
    %v313 = vld [vmem:[%s3 + $0x2fc] sm:$0xf]
    %v314 = vld [vmem:[%s3 + $0x300] sm:$0xff]
    %v315 = vld [vmem:[%s3 + $0x308] sm:$0xf]
    %v316 = vld [vmem:[%s3 + $0x30c] sm:$0xff]
    %v317 = vld [vmem:[%s3 + $0x314] sm:$0xf]
    %v318 = vld [vmem:[%s3 + $0x318] sm:$0xff]
    %v319 = vld [vmem:[%s3 + $0x320] sm:$0xf]
    %v320 = vld [vmem:[%s3 + $0x324] sm:$0xff]
    %v321 = vld [vmem:[%s3 + $0x32c] sm:$0xf]
    %v322 = vld [vmem:[%s3 + $0x330] sm:$0xff]
    %v323 = vld [vmem:[%s3 + $0x338] sm:$0xf]
    %v324 = vld [vmem:[%s3 + $0x33c] sm:$0xff]
    %v325 = vld [vmem:[%s3 + $0x344] sm:$0xf]
    %v326 = vld [vmem:[%s3 + $0x348] sm:$0xff]
    %v327 = vld [vmem:[%s3 + $0x350] sm:$0xf]
    %v328 = vld [vmem:[%s3 + $0x354] sm:$0xff]
    %v329 = vld [vmem:[%s3 + $0x35c] sm:$0xf]
    %v330 = vld [vmem:[%s3 + $0x360] sm:$0xff]
    %v331 = vld [vmem:[%s3 + $0x368] sm:$0xf]
    %v332 = vld [vmem:[%s3 + $0x36c] sm:$0xff]
    %v333 = vld [vmem:[%s3 + $0x374] sm:$0xf]
    %v334 = vld [vmem:[%s3 + $0x378] sm:$0xff]
    %v335 = vld [vmem:[%s3 + $0x380] sm:$0xf]
    %v336 = vld [vmem:[%s3 + $0x384] sm:$0xff]
    %v337 = vld [vmem:[%s3 + $0x38c] sm:$0xf]
    %v338 = vld [vmem:[%s3 + $0x390] sm:$0xff]
    %v339 = vld [vmem:[%s3 + $0x398] sm:$0xf]
    %v340 = vld [vmem:[%s3 + $0x39c] sm:$0xff]
    %v341 = vld [vmem:[%s3 + $0x3a4] sm:$0xf]
    %v342 = vld [vmem:[%s3 + $0x3a8] sm:$0xff]
    %v343 = vld [vmem:[%s3 + $0x3b0] sm:$0xf]
    %v344 = vld [vmem:[%s3 + $0x3b4] sm:$0xff]
    %v345 = vld [vmem:[%s3 + $0x3bc] sm:$0xf]
    %v347 = vperm.slane %v27, 0
    %v348 = vperm.slane %v27, 1
    %v349 = vperm.slane %v27, 2
    %v513 = vunpack.c.l.b16 %v186
    %v514 = vunpack.c.h.b16 %v186
    %v515 = vunpack.c.l.b16 %v187
    %v516 = vunpack.c.l.b16 %v188
    %v517 = vunpack.c.h.b16 %v188
    %v518 = vunpack.c.l.b16 %v189
    %v519 = vunpack.c.l.b16 %v190
    %v520 = vunpack.c.h.b16 %v190
    %v521 = vunpack.c.l.b16 %v191
    %v522 = vunpack.c.l.b16 %v192
    %v523 = vunpack.c.h.b16 %v192
    %v524 = vunpack.c.l.b16 %v193
    %v525 = vunpack.c.l.b16 %v194
    %v526 = vunpack.c.h.b16 %v194
    %v527 = vunpack.c.l.b16 %v195
    %v528 = vunpack.c.l.b16 %v196
    %v529 = vunpack.c.h.b16 %v196
    %v530 = vunpack.c.l.b16 %v197
    %v531 = vunpack.c.l.b16 %v198
    %v532 = vunpack.c.h.b16 %v198
    %v533 = vunpack.c.l.b16 %v199
    %v534 = vunpack.c.l.b16 %v200
    %v535 = vunpack.c.h.b16 %v200
    %v536 = vunpack.c.l.b16 %v201
    %v537 = vunpack.c.l.b16 %v202
    %v538 = vunpack.c.h.b16 %v202
    %v539 = vunpack.c.l.b16 %v203
    %v540 = vunpack.c.l.b16 %v204
    %v541 = vunpack.c.h.b16 %v204
    %v542 = vunpack.c.l.b16 %v205
    %v543 = vunpack.c.l.b16 %v206
    %v544 = vunpack.c.h.b16 %v206
    %v545 = vunpack.c.l.b16 %v207
    %v546 = vunpack.c.l.b16 %v208
    %v547 = vunpack.c.h.b16 %v208
    %v548 = vunpack.c.l.b16 %v209
    %v549 = vunpack.c.l.b16 %v210
    %v550 = vunpack.c.h.b16 %v210
    %v551 = vunpack.c.l.b16 %v211
    %v552 = vunpack.c.l.b16 %v212
    %v553 = vunpack.c.h.b16 %v212
    %v554 = vunpack.c.l.b16 %v213
    %v555 = vunpack.c.l.b16 %v214
    %v556 = vunpack.c.h.b16 %v214
    %v557 = vunpack.c.l.b16 %v215
    %v558 = vunpack.c.l.b16 %v216
    %v559 = vunpack.c.h.b16 %v216
    %v560 = vunpack.c.l.b16 %v217
    %v561 = vunpack.c.l.b16 %v218
    %v562 = vunpack.c.h.b16 %v218
    %v563 = vunpack.c.l.b16 %v219
    %v564 = vunpack.c.l.b16 %v220
    %v565 = vunpack.c.h.b16 %v220
    %v566 = vunpack.c.l.b16 %v221
    %v567 = vunpack.c.l.b16 %v222
    %v568 = vunpack.c.h.b16 %v222
    %v569 = vunpack.c.l.b16 %v223
    %v570 = vunpack.c.l.b16 %v224
    %v571 = vunpack.c.h.b16 %v224
    %v572 = vunpack.c.l.b16 %v225
    %v573 = vunpack.c.l.b16 %v226
    %v574 = vunpack.c.h.b16 %v226
    %v575 = vunpack.c.l.b16 %v227
    %v576 = vunpack.c.l.b16 %v228
    %v577 = vunpack.c.h.b16 %v228
    %v578 = vunpack.c.l.b16 %v229
    %v579 = vunpack.c.l.b16 %v230
    %v580 = vunpack.c.h.b16 %v230
    %v581 = vunpack.c.l.b16 %v231
    %v582 = vunpack.c.l.b16 %v232
    %v583 = vunpack.c.h.b16 %v232
    %v584 = vunpack.c.l.b16 %v233
    %v585 = vunpack.c.l.b16 %v234
    %v586 = vunpack.c.h.b16 %v234
    %v587 = vunpack.c.l.b16 %v235
    %v588 = vunpack.c.l.b16 %v236
    %v589 = vunpack.c.h.b16 %v236
    %v590 = vunpack.c.l.b16 %v237
    %v591 = vunpack.c.l.b16 %v238
    %v592 = vunpack.c.h.b16 %v238
    %v593 = vunpack.c.l.b16 %v239
    %v594 = vunpack.c.l.b16 %v240
    %v595 = vunpack.c.h.b16 %v240
    %v596 = vunpack.c.l.b16 %v241
    %v597 = vunpack.c.l.b16 %v242
    %v598 = vunpack.c.h.b16 %v242
    %v599 = vunpack.c.l.b16 %v243
    %v600 = vunpack.c.l.b16 %v244
    %v601 = vunpack.c.h.b16 %v244
    %v602 = vunpack.c.l.b16 %v245
    %v603 = vunpack.c.l.b16 %v246
    %v604 = vunpack.c.h.b16 %v246
    %v605 = vunpack.c.l.b16 %v247
    %v606 = vunpack.c.l.b16 %v248
    %v607 = vunpack.c.h.b16 %v248
    %v608 = vunpack.c.l.b16 %v249
    %v609 = vunpack.c.l.b16 %v250
    %v610 = vunpack.c.h.b16 %v250
    %v611 = vunpack.c.l.b16 %v251
    %v612 = vunpack.c.l.b16 %v252
    %v613 = vunpack.c.h.b16 %v252
    %v614 = vunpack.c.l.b16 %v253
    %v615 = vunpack.c.l.b16 %v254
    %v616 = vunpack.c.h.b16 %v254
    %v617 = vunpack.c.l.b16 %v255
    %v618 = vunpack.c.l.b16 %v256
    %v619 = vunpack.c.h.b16 %v256
    %v620 = vunpack.c.l.b16 %v257
    %v621 = vunpack.c.l.b16 %v258
    %v622 = vunpack.c.h.b16 %v258
    %v623 = vunpack.c.l.b16 %v259
    %v624 = vunpack.c.l.b16 %v260
    %v625 = vunpack.c.h.b16 %v260
    %v626 = vunpack.c.l.b16 %v261
    %v627 = vunpack.c.l.b16 %v262
    %v628 = vunpack.c.h.b16 %v262
    %v629 = vunpack.c.l.b16 %v263
    %v630 = vunpack.c.l.b16 %v264
    %v631 = vunpack.c.h.b16 %v264
    %v632 = vunpack.c.l.b16 %v265
    %v633 = vunpack.c.l.b16 %v266
    %v634 = vunpack.c.h.b16 %v266
    %v635 = vunpack.c.l.b16 %v267
    %v636 = vunpack.c.l.b16 %v268
    %v637 = vunpack.c.h.b16 %v268
    %v638 = vunpack.c.l.b16 %v269
    %v639 = vunpack.c.l.b16 %v270
    %v640 = vunpack.c.h.b16 %v270
    %v641 = vunpack.c.l.b16 %v271
    %v642 = vunpack.c.l.b16 %v272
    %v643 = vunpack.c.h.b16 %v272
    %v644 = vunpack.c.l.b16 %v273
    %v645 = vunpack.c.l.b16 %v274
    %v646 = vunpack.c.h.b16 %v274
    %v647 = vunpack.c.l.b16 %v275
    %v648 = vunpack.c.l.b16 %v276
    %v649 = vunpack.c.h.b16 %v276
    %v650 = vunpack.c.l.b16 %v277
    %v651 = vunpack.c.l.b16 %v278
    %v652 = vunpack.c.h.b16 %v278
    %v653 = vunpack.c.l.b16 %v279
    %v654 = vunpack.c.l.b16 %v280
    %v655 = vunpack.c.h.b16 %v280
    %v656 = vunpack.c.l.b16 %v281
    %v657 = vunpack.c.l.b16 %v282
    %v658 = vunpack.c.h.b16 %v282
    %v659 = vunpack.c.l.b16 %v283
    %v660 = vunpack.c.l.b16 %v284
    %v661 = vunpack.c.h.b16 %v284
    %v662 = vunpack.c.l.b16 %v285
    %v663 = vunpack.c.l.b16 %v286
    %v664 = vunpack.c.h.b16 %v286
    %v665 = vunpack.c.l.b16 %v287
    %v666 = vunpack.c.l.b16 %v288
    %v667 = vunpack.c.h.b16 %v288
    %v668 = vunpack.c.l.b16 %v289
    %v669 = vunpack.c.l.b16 %v290
    %v670 = vunpack.c.h.b16 %v290
    %v671 = vunpack.c.l.b16 %v291
    %v672 = vunpack.c.l.b16 %v292
    %v673 = vunpack.c.h.b16 %v292
    %v674 = vunpack.c.l.b16 %v293
    %v675 = vunpack.c.l.b16 %v294
    %v676 = vunpack.c.h.b16 %v294
    %v677 = vunpack.c.l.b16 %v295
    %v678 = vunpack.c.l.b16 %v296
    %v679 = vunpack.c.h.b16 %v296
    %v680 = vunpack.c.l.b16 %v297
    %v681 = vunpack.c.l.b16 %v298
    %v682 = vunpack.c.h.b16 %v298
    %v683 = vunpack.c.l.b16 %v299
    %v684 = vunpack.c.l.b16 %v300
    %v685 = vunpack.c.h.b16 %v300
    %v686 = vunpack.c.l.b16 %v301
    %v687 = vunpack.c.l.b16 %v302
    %v688 = vunpack.c.h.b16 %v302
    %v689 = vunpack.c.l.b16 %v303
    %v690 = vunpack.c.l.b16 %v304
    %v691 = vunpack.c.h.b16 %v304
    %v692 = vunpack.c.l.b16 %v305
    %v693 = vunpack.c.l.b16 %v306
    %v694 = vunpack.c.h.b16 %v306
    %v695 = vunpack.c.l.b16 %v307
    %v696 = vunpack.c.l.b16 %v308
    %v697 = vunpack.c.h.b16 %v308
    %v698 = vunpack.c.l.b16 %v309
    %v699 = vunpack.c.l.b16 %v310
    %v700 = vunpack.c.h.b16 %v310
    %v701 = vunpack.c.l.b16 %v311
    %v702 = vunpack.c.l.b16 %v312
    %v703 = vunpack.c.h.b16 %v312
    %v704 = vunpack.c.l.b16 %v313
    %v705 = vunpack.c.l.b16 %v314
    %v706 = vunpack.c.h.b16 %v314
    %v707 = vunpack.c.l.b16 %v315
    %v708 = vunpack.c.l.b16 %v316
    %v709 = vunpack.c.h.b16 %v316
    %v710 = vunpack.c.l.b16 %v317
    %v711 = vunpack.c.l.b16 %v318
    %v712 = vunpack.c.h.b16 %v318
    %v713 = vunpack.c.l.b16 %v319
    %v714 = vunpack.c.l.b16 %v320
    %v715 = vunpack.c.h.b16 %v320
    %v716 = vunpack.c.l.b16 %v321
    %v717 = vunpack.c.l.b16 %v322
    %v718 = vunpack.c.h.b16 %v322
    %v719 = vunpack.c.l.b16 %v323
    %v720 = vunpack.c.l.b16 %v324
    %v721 = vunpack.c.h.b16 %v324
    %v722 = vunpack.c.l.b16 %v325
    %v723 = vunpack.c.l.b16 %v326
    %v724 = vunpack.c.h.b16 %v326
    %v725 = vunpack.c.l.b16 %v327
    %v726 = vunpack.c.l.b16 %v328
    %v727 = vunpack.c.h.b16 %v328
    %v728 = vunpack.c.l.b16 %v329
    %v729 = vunpack.c.l.b16 %v330
    %v730 = vunpack.c.h.b16 %v330
    %v731 = vunpack.c.l.b16 %v331
    %v732 = vunpack.c.l.b16 %v332
    %v733 = vunpack.c.h.b16 %v332
    %v734 = vunpack.c.l.b16 %v333
    %v735 = vunpack.c.l.b16 %v334
    %v736 = vunpack.c.h.b16 %v334
    %v737 = vunpack.c.l.b16 %v335
    %v738 = vunpack.c.l.b16 %v336
    %v739 = vunpack.c.h.b16 %v336
    %v740 = vunpack.c.l.b16 %v337
    %v741 = vunpack.c.l.b16 %v338
    %v742 = vunpack.c.h.b16 %v338
    %v743 = vunpack.c.l.b16 %v339
    %v744 = vunpack.c.l.b16 %v340
    %v745 = vunpack.c.h.b16 %v340
    %v746 = vunpack.c.l.b16 %v341
    %v747 = vunpack.c.l.b16 %v342
    %v748 = vunpack.c.h.b16 %v342
    %v749 = vunpack.c.l.b16 %v343
    %v750 = vunpack.c.l.b16 %v344
    %v751 = vunpack.c.h.b16 %v344
    %v752 = vunpack.c.l.b16 %v345
    %v753 = vpack.c.b16 %v516, %v513
    %v754 = vpack.c.b16 %v517, %v514
    %v755 = vpack.c.b16 %v518, %v515
    %v756 = vpack.c.b16 %v522, %v519
    %v757 = vpack.c.b16 %v523, %v520
    %v758 = vpack.c.b16 %v524, %v521
    %v759 = vpack.c.b16 %v528, %v525
    %v760 = vpack.c.b16 %v529, %v526
    %v761 = vpack.c.b16 %v530, %v527
    %v762 = vpack.c.b16 %v534, %v531
    %v763 = vpack.c.b16 %v535, %v532
    %v764 = vpack.c.b16 %v536, %v533
    %v765 = vpack.c.b16 %v540, %v537
    %v766 = vpack.c.b16 %v541, %v538
    %v767 = vpack.c.b16 %v542, %v539
    %v768 = vpack.c.b16 %v546, %v543
    %v769 = vpack.c.b16 %v547, %v544
    %v770 = vpack.c.b16 %v548, %v545
    %v771 = vpack.c.b16 %v552, %v549
    %v772 = vpack.c.b16 %v553, %v550
    %v773 = vpack.c.b16 %v554, %v551
    %v774 = vpack.c.b16 %v558, %v555
    %v775 = vpack.c.b16 %v559, %v556
    %v776 = vpack.c.b16 %v560, %v557
    %v777 = vpack.c.b16 %v564, %v561
    %v778 = vpack.c.b16 %v565, %v562
    %v779 = vpack.c.b16 %v566, %v563
    %v780 = vpack.c.b16 %v570, %v567
    %v781 = vpack.c.b16 %v571, %v568
    %v782 = vpack.c.b16 %v572, %v569
    %v783 = vpack.c.b16 %v576, %v573
    %v784 = vpack.c.b16 %v577, %v574
    %v785 = vpack.c.b16 %v578, %v575
    %v786 = vpack.c.b16 %v582, %v579
    %v787 = vpack.c.b16 %v583, %v580
    %v788 = vpack.c.b16 %v584, %v581
    %v789 = vpack.c.b16 %v588, %v585
    %v790 = vpack.c.b16 %v589, %v586
    %v791 = vpack.c.b16 %v590, %v587
    %v792 = vpack.c.b16 %v594, %v591
    %v793 = vpack.c.b16 %v595, %v592
    %v794 = vpack.c.b16 %v596, %v593
    %v795 = vpack.c.b16 %v600, %v597
    %v796 = vpack.c.b16 %v601, %v598
    %v797 = vpack.c.b16 %v602, %v599
    %v798 = vpack.c.b16 %v606, %v603
    %v799 = vpack.c.b16 %v607, %v604
    %v800 = vpack.c.b16 %v608, %v605
    %v801 = vpack.c.b16 %v612, %v609
    %v802 = vpack.c.b16 %v613, %v610
    %v803 = vpack.c.b16 %v614, %v611
    %v804 = vpack.c.b16 %v618, %v615
    %v805 = vpack.c.b16 %v619, %v616
    %v806 = vpack.c.b16 %v620, %v617
    %v807 = vpack.c.b16 %v624, %v621
    %v808 = vpack.c.b16 %v625, %v622
    %v809 = vpack.c.b16 %v626, %v623
    %v810 = vpack.c.b16 %v630, %v627
    %v811 = vpack.c.b16 %v631, %v628
    %v812 = vpack.c.b16 %v632, %v629
    %v813 = vpack.c.b16 %v636, %v633
    %v814 = vpack.c.b16 %v637, %v634
    %v815 = vpack.c.b16 %v638, %v635
    %v816 = vpack.c.b16 %v642, %v639
    %v817 = vpack.c.b16 %v643, %v640
    %v818 = vpack.c.b16 %v644, %v641
    %v819 = vpack.c.b16 %v648, %v645
    %v820 = vpack.c.b16 %v649, %v646
    %v821 = vpack.c.b16 %v650, %v647
    %v822 = vpack.c.b16 %v654, %v651
    %v823 = vpack.c.b16 %v655, %v652
    %v824 = vpack.c.b16 %v656, %v653
    %v825 = vpack.c.b16 %v660, %v657
    %v826 = vpack.c.b16 %v661, %v658
    %v827 = vpack.c.b16 %v662, %v659
    %v828 = vpack.c.b16 %v666, %v663
    %v829 = vpack.c.b16 %v667, %v664
    %v830 = vpack.c.b16 %v668, %v665
    %v831 = vpack.c.b16 %v672, %v669
    %v832 = vpack.c.b16 %v673, %v670
    %v833 = vpack.c.b16 %v674, %v671
    %v834 = vpack.c.b16 %v678, %v675
    %v835 = vpack.c.b16 %v679, %v676
    %v836 = vpack.c.b16 %v680, %v677
    %v837 = vpack.c.b16 %v684, %v681
    %v838 = vpack.c.b16 %v685, %v682
    %v839 = vpack.c.b16 %v686, %v683
    %v840 = vpack.c.b16 %v690, %v687
    %v841 = vpack.c.b16 %v691, %v688
    %v842 = vpack.c.b16 %v692, %v689
    %v843 = vpack.c.b16 %v696, %v693
    %v844 = vpack.c.b16 %v697, %v694
    %v845 = vpack.c.b16 %v698, %v695
    %v846 = vpack.c.b16 %v702, %v699
    %v847 = vpack.c.b16 %v703, %v700
    %v848 = vpack.c.b16 %v704, %v701
    %v849 = vpack.c.b16 %v708, %v705
    %v850 = vpack.c.b16 %v709, %v706
    %v851 = vpack.c.b16 %v710, %v707
    %v852 = vpack.c.b16 %v714, %v711
    %v853 = vpack.c.b16 %v715, %v712
    %v854 = vpack.c.b16 %v716, %v713
    %v855 = vpack.c.b16 %v720, %v717
    %v856 = vpack.c.b16 %v721, %v718
    %v857 = vpack.c.b16 %v722, %v719
    %v858 = vpack.c.b16 %v726, %v723
    %v859 = vpack.c.b16 %v727, %v724
    %v860 = vpack.c.b16 %v728, %v725
    %v861 = vpack.c.b16 %v732, %v729
    %v862 = vpack.c.b16 %v733, %v730
    %v863 = vpack.c.b16 %v734, %v731
    %v864 = vpack.c.b16 %v738, %v735
    %v865 = vpack.c.b16 %v739, %v736
    %v866 = vpack.c.b16 %v740, %v737
    %v867 = vpack.c.b16 %v744, %v741
    %v868 = vpack.c.b16 %v745, %v742
    %v869 = vpack.c.b16 %v746, %v743
    %v870 = vpack.c.b16 %v750, %v747
    %v871 = vpack.c.b16 %v751, %v748
    %v872 = vpack.c.b16 %v752, %v749
    %993 = vmatpush.bf16.msra.mxu0 %v774
    %994 = vmatpush.bf16.msra.mxu0 %v771
    %995 = vmatpush.bf16.msra.mxu0 %v768
    %996 = vmatpush.bf16.msra.mxu0 %v765
    %997 = vmatpush.bf16.msra.mxu0 %v762
    %998 = vmatpush.bf16.msra.mxu0 %v759
    %999 = vmatpush.bf16.msra.mxu0 %v756
    %1000 = vmatpush.bf16.msra.mxu0 %v753
    %1001 = vmatmul.bf16.gmra.mxu0 %v181
    %v1002 = vpop.f32.mrf.mxu0
    %v1003 = vadd.f32 %v347, %v1002
    %v1004 = vpop.f32.mrf.mxu0
    %1005 = vdwg.mxu0
    %1006 = vmatpush.bf16.msra.mxu0 %v798
    %1007 = vmatpush.bf16.msra.mxu0 %v795
    %1008 = vmatpush.bf16.msra.mxu0 %v792
    %1009 = vmatpush.bf16.msra.mxu0 %v789
    %1010 = vmatpush.bf16.msra.mxu0 %v786
    %1011 = vmatpush.bf16.msra.mxu0 %v783
    %1012 = vmatpush.bf16.msra.mxu0 %v780
    %1013 = vmatpush.bf16.msra.mxu0 %v777
    %1014 = vmatmul.bf16.gmra.mxu0 %v182
    %v1015 = vpop.f32.mrf.mxu0
    %v1016 = vadd.f32 %v1003, %v1015
    %v1017 = vpop.f32.mrf.mxu0
    %1018 = vdwg.mxu0
    %1019 = vmatpush.bf16.msra.mxu0 %v822
    %1020 = vmatpush.bf16.msra.mxu0 %v819
    %1021 = vmatpush.bf16.msra.mxu0 %v816
    %1022 = vmatpush.bf16.msra.mxu0 %v813
    %1023 = vmatpush.bf16.msra.mxu0 %v810
    %1024 = vmatpush.bf16.msra.mxu0 %v807
    %1025 = vmatpush.bf16.msra.mxu0 %v804
    %1026 = vmatpush.bf16.msra.mxu0 %v801
    %1027 = vmatmul.bf16.gmra.mxu0 %v183
    %v1028 = vpop.f32.mrf.mxu0
    %v1029 = vadd.f32 %v1016, %v1028
    %v1030 = vpop.f32.mrf.mxu0
    %1031 = vdwg.mxu0
    %1032 = vmatpush.bf16.msra.mxu0 %v846
    %1033 = vmatpush.bf16.msra.mxu0 %v843
    %1034 = vmatpush.bf16.msra.mxu0 %v840
    %1035 = vmatpush.bf16.msra.mxu0 %v837
    %1036 = vmatpush.bf16.msra.mxu0 %v834
    %1037 = vmatpush.bf16.msra.mxu0 %v831
    %1038 = vmatpush.bf16.msra.mxu0 %v828
    %1039 = vmatpush.bf16.msra.mxu0 %v825
    %1040 = vmatmul.bf16.gmra.mxu0 %v184
    %v1041 = vpop.f32.mrf.mxu0
    %v1042 = vadd.f32 %v1029, %v1041
    %v1043 = vpop.f32.mrf.mxu0
    %1044 = vdwg.mxu0
    %1045 = vmatpush.bf16.msra.mxu0 %v870
    %1046 = vmatpush.bf16.msra.mxu0 %v867
    %1047 = vmatpush.bf16.msra.mxu0 %v864
    %1048 = vmatpush.bf16.msra.mxu0 %v861
    %1049 = vmatpush.bf16.msra.mxu0 %v858
    %1050 = vmatpush.bf16.msra.mxu0 %v855
    %1051 = vmatpush.bf16.msra.mxu0 %v852
    %1052 = vmatpush.bf16.msra.mxu0 %v849
    %1053 = vmatmul.bf16.gmra.mxu0 %v185
    %v1054 = vpop.f32.mrf.mxu0
    %v1055 = vadd.f32 %v1042, %v1054
    %v1056 = vpop.f32.mrf.mxu0
    %1057 = vdwg.mxu0
    %1058 = vmatpush.bf16.msra.mxu0 %v775
    %1059 = vmatpush.bf16.msra.mxu0 %v772
    %1060 = vmatpush.bf16.msra.mxu0 %v769
    %1061 = vmatpush.bf16.msra.mxu0 %v766
    %1062 = vmatpush.bf16.msra.mxu0 %v763
    %1063 = vmatpush.bf16.msra.mxu0 %v760
    %1064 = vmatpush.bf16.msra.mxu0 %v757
    %1065 = vmatpush.bf16.msra.mxu0 %v754
    %1066 = vmatmul.bf16.gmra.mxu0 %v181
    %v1067 = vpop.f32.mrf.mxu0
    %v1068 = vadd.f32 %v348, %v1067
    %v1069 = vpop.f32.mrf.mxu0
    %1070 = vdwg.mxu0
    %1071 = vmatpush.bf16.msra.mxu0 %v799
    %1072 = vmatpush.bf16.msra.mxu0 %v796
    %1073 = vmatpush.bf16.msra.mxu0 %v793
    %1074 = vmatpush.bf16.msra.mxu0 %v790
    %1075 = vmatpush.bf16.msra.mxu0 %v787
    %1076 = vmatpush.bf16.msra.mxu0 %v784
    %1077 = vmatpush.bf16.msra.mxu0 %v781
    %1078 = vmatpush.bf16.msra.mxu0 %v778
    %1079 = vmatmul.bf16.gmra.mxu0 %v182
    %v1080 = vpop.f32.mrf.mxu0
    %v1081 = vadd.f32 %v1068, %v1080
    %v1082 = vpop.f32.mrf.mxu0
    %1083 = vdwg.mxu0
    %1084 = vmatpush.bf16.msra.mxu0 %v823
    %1085 = vmatpush.bf16.msra.mxu0 %v820
    %1086 = vmatpush.bf16.msra.mxu0 %v817
    %1087 = vmatpush.bf16.msra.mxu0 %v814
    %1088 = vmatpush.bf16.msra.mxu0 %v811
    %1089 = vmatpush.bf16.msra.mxu0 %v808
    %1090 = vmatpush.bf16.msra.mxu0 %v805
    %1091 = vmatpush.bf16.msra.mxu0 %v802
    %1092 = vmatmul.bf16.gmra.mxu0 %v183
    %v1093 = vpop.f32.mrf.mxu0
    %v1094 = vadd.f32 %v1081, %v1093
    %v1095 = vpop.f32.mrf.mxu0
    %1096 = vdwg.mxu0
    %1097 = vmatpush.bf16.msra.mxu0 %v847
    %1098 = vmatpush.bf16.msra.mxu0 %v844
    %1099 = vmatpush.bf16.msra.mxu0 %v841
    %1100 = vmatpush.bf16.msra.mxu0 %v838
    %1101 = vmatpush.bf16.msra.mxu0 %v835
    %1102 = vmatpush.bf16.msra.mxu0 %v832
    %1103 = vmatpush.bf16.msra.mxu0 %v829
    %1104 = vmatpush.bf16.msra.mxu0 %v826
    %1105 = vmatmul.bf16.gmra.mxu0 %v184
    %v1106 = vpop.f32.mrf.mxu0
    %v1107 = vadd.f32 %v1094, %v1106
    %v1108 = vpop.f32.mrf.mxu0
    %1109 = vdwg.mxu0
    %1110 = vmatpush.bf16.msra.mxu0 %v871
    %1111 = vmatpush.bf16.msra.mxu0 %v868
    %1112 = vmatpush.bf16.msra.mxu0 %v865
    %1113 = vmatpush.bf16.msra.mxu0 %v862
    %1114 = vmatpush.bf16.msra.mxu0 %v859
    %1115 = vmatpush.bf16.msra.mxu0 %v856
    %1116 = vmatpush.bf16.msra.mxu0 %v853
    %1117 = vmatpush.bf16.msra.mxu0 %v850
    %1118 = vmatmul.bf16.gmra.mxu0 %v185
    %v1119 = vpop.f32.mrf.mxu0
    %v1120 = vadd.f32 %v1107, %v1119
    %v1121 = vpop.f32.mrf.mxu0
    %1122 = vdwg.mxu0
    %1123 = vmatpush.bf16.msra.mxu0 %v776
    %1124 = vmatpush.bf16.msra.mxu0 %v773
    %1125 = vmatpush.bf16.msra.mxu0 %v770
    %1126 = vmatpush.bf16.msra.mxu0 %v767
    %1127 = vmatpush.bf16.msra.mxu0 %v764
    %1128 = vmatpush.bf16.msra.mxu0 %v761
    %1129 = vmatpush.bf16.msra.mxu0 %v758
    %1130 = vmatpush.bf16.msra.mxu0 %v755
    %1131 = vmatmul.bf16.gmra.mxu0 %v181
    %v1132 = vpop.f32.mrf.mxu0
    %v1133 = vadd.f32 %v349, %v1132
    %v1134 = vpop.f32.mrf.mxu0
    %1135 = vdwg.mxu0
    %1136 = vmatpush.bf16.msra.mxu0 %v800
    %1137 = vmatpush.bf16.msra.mxu0 %v797
    %1138 = vmatpush.bf16.msra.mxu0 %v794
    %1139 = vmatpush.bf16.msra.mxu0 %v791
    %1140 = vmatpush.bf16.msra.mxu0 %v788
    %1141 = vmatpush.bf16.msra.mxu0 %v785
    %1142 = vmatpush.bf16.msra.mxu0 %v782
    %1143 = vmatpush.bf16.msra.mxu0 %v779
    %1144 = vmatmul.bf16.gmra.mxu0 %v182
    %v1145 = vpop.f32.mrf.mxu0
    %v1146 = vadd.f32 %v1133, %v1145
    %v1147 = vpop.f32.mrf.mxu0
    %1148 = vdwg.mxu0
    %1149 = vmatpush.bf16.msra.mxu0 %v824
    %1150 = vmatpush.bf16.msra.mxu0 %v821
    %1151 = vmatpush.bf16.msra.mxu0 %v818
    %1152 = vmatpush.bf16.msra.mxu0 %v815
    %1153 = vmatpush.bf16.msra.mxu0 %v812
    %1154 = vmatpush.bf16.msra.mxu0 %v809
    %1155 = vmatpush.bf16.msra.mxu0 %v806
    %1156 = vmatpush.bf16.msra.mxu0 %v803
    %1157 = vmatmul.bf16.gmra.mxu0 %v183
    %v1158 = vpop.f32.mrf.mxu0
    %v1159 = vadd.f32 %v1146, %v1158
    %v1160 = vpop.f32.mrf.mxu0
    %1161 = vdwg.mxu0
    %1162 = vmatpush.bf16.msra.mxu0 %v848
    %1163 = vmatpush.bf16.msra.mxu0 %v845
    %1164 = vmatpush.bf16.msra.mxu0 %v842
    %1165 = vmatpush.bf16.msra.mxu0 %v839
    %1166 = vmatpush.bf16.msra.mxu0 %v836
    %1167 = vmatpush.bf16.msra.mxu0 %v833
    %1168 = vmatpush.bf16.msra.mxu0 %v830
    %1169 = vmatpush.bf16.msra.mxu0 %v827
    %1170 = vmatmul.bf16.gmra.mxu0 %v184
    %v1171 = vpop.f32.mrf.mxu0
    %v1172 = vadd.f32 %v1159, %v1171
    %v1173 = vpop.f32.mrf.mxu0
    %1174 = vdwg.mxu0
    %1175 = vmatpush.bf16.msra.mxu0 %v872
    %1176 = vmatpush.bf16.msra.mxu0 %v869
    %1177 = vmatpush.bf16.msra.mxu0 %v866
    %1178 = vmatpush.bf16.msra.mxu0 %v863
    %1179 = vmatpush.bf16.msra.mxu0 %v860
    %1180 = vmatpush.bf16.msra.mxu0 %v857
    %1181 = vmatpush.bf16.msra.mxu0 %v854
    %1182 = vmatpush.bf16.msra.mxu0 %v851
    %1183 = vmatmul.bf16.gmra.mxu0 %v185
    %v1184 = vpop.f32.mrf.mxu0
    %v1185 = vadd.f32 %v1172, %v1184
    %v1186 = vpop.f32.mrf.mxu0
    %1187 = vdwg.mxu0
    %v1188 = vmax.f32 %v1055, 0.0
    %v1189 = vmax.f32 %v1120, 0.0
    %v1190 = vmax.f32 %v1185, 0.0
    %v1191 = vld [vmem:[%s4] sm:$0xf]
    %v1192 = vld [vmem:[%s4 + $0x4] sm:$0xf]
    %v1193 = vld [vmem:[%s4 + $0x8] sm:$0xf]
    %v1194 = vld [vmem:[%s4 + $0xc] sm:$0xf]
    %v1195 = vld [vmem:[%s4 + $0x10] sm:$0xf]
    %v1196 = vld [vmem:[%s4 + $0x14] sm:$0xf]
    %v1197 = vld [vmem:[%s4 + $0x18] sm:$0xf]
    %v1198 = vld [vmem:[%s4 + $0x1c] sm:$0xf]
    %v1199 = vld [vmem:[%s4 + $0x20] sm:$0xf]
    %v1200 = vld [vmem:[%s4 + $0x24] sm:$0xf]
    %v1201 = vld [vmem:[%s4 + $0x28] sm:$0xf]
    %v1202 = vld [vmem:[%s4 + $0x2c] sm:$0xf]
    %v1203 = vld [vmem:[%s4 + $0x30] sm:$0xf]
    %v1204 = vld [vmem:[%s4 + $0x34] sm:$0xf]
    %v1205 = vld [vmem:[%s4 + $0x38] sm:$0xf]
    %v1206 = vld [vmem:[%s4 + $0x3c] sm:$0xf]
    %v1207 = vld [vmem:[%s4 + $0x40] sm:$0xf]
    %v1208 = vld [vmem:[%s4 + $0x44] sm:$0xf]
    %v1209 = vld [vmem:[%s4 + $0x48] sm:$0xf]
    %v1210 = vld [vmem:[%s4 + $0x4c] sm:$0xf]
    %v1211 = vld [vmem:[%s4 + $0x50] sm:$0xf]
    %v1212 = vld [vmem:[%s4 + $0x54] sm:$0xf]
    %v1213 = vld [vmem:[%s4 + $0x58] sm:$0xf]
    %v1214 = vld [vmem:[%s4 + $0x5c] sm:$0xf]
    %v1215 = vld [vmem:[%s4 + $0x60] sm:$0xf]
    %v1216 = vld [vmem:[%s4 + $0x64] sm:$0xf]
    %v1217 = vld [vmem:[%s4 + $0x68] sm:$0xf]
    %v1218 = vld [vmem:[%s4 + $0x6c] sm:$0xf]
    %v1219 = vld [vmem:[%s4 + $0x70] sm:$0xf]
    %v1220 = vld [vmem:[%s4 + $0x74] sm:$0xf]
    %v1221 = vld [vmem:[%s4 + $0x78] sm:$0xf]
    %v1222 = vld [vmem:[%s4 + $0x7c] sm:$0xf]
    %v1223 = vld [vmem:[%s4 + $0x80] sm:$0xf]
    %v1224 = vld [vmem:[%s4 + $0x84] sm:$0xf]
    %v1225 = vld [vmem:[%s4 + $0x88] sm:$0xf]
    %v1226 = vld [vmem:[%s4 + $0x8c] sm:$0xf]
    %v1227 = vld [vmem:[%s4 + $0x90] sm:$0xf]
    %v1228 = vld [vmem:[%s4 + $0x94] sm:$0xf]
    %v1229 = vld [vmem:[%s4 + $0x98] sm:$0xf]
    %v1230 = vld [vmem:[%s4 + $0x9c] sm:$0xf]
    %v1231 = vpack.c.bf16 %v1188, %v1188
    %v1232 = vpack.c.bf16 %v1189, %v1189
    %v1233 = vpack.c.bf16 %v1190, %v1190
    %v1274 = vunpack.c.l.b16 %v1191
    %v1275 = vunpack.c.l.b16 %v1192
    %v1276 = vunpack.c.l.b16 %v1193
    %v1277 = vunpack.c.l.b16 %v1194
    %v1278 = vunpack.c.l.b16 %v1195
    %v1279 = vunpack.c.l.b16 %v1196
    %v1280 = vunpack.c.l.b16 %v1197
    %v1281 = vunpack.c.l.b16 %v1198
    %v1282 = vunpack.c.l.b16 %v1199
    %v1283 = vunpack.c.l.b16 %v1200
    %v1284 = vunpack.c.l.b16 %v1201
    %v1285 = vunpack.c.l.b16 %v1202
    %v1286 = vunpack.c.l.b16 %v1203
    %v1287 = vunpack.c.l.b16 %v1204
    %v1288 = vunpack.c.l.b16 %v1205
    %v1289 = vunpack.c.l.b16 %v1206
    %v1290 = vunpack.c.l.b16 %v1207
    %v1291 = vunpack.c.l.b16 %v1208
    %v1292 = vunpack.c.l.b16 %v1209
    %v1293 = vunpack.c.l.b16 %v1210
    %v1294 = vunpack.c.l.b16 %v1211
    %v1295 = vunpack.c.l.b16 %v1212
    %v1296 = vunpack.c.l.b16 %v1213
    %v1297 = vunpack.c.l.b16 %v1214
    %v1298 = vunpack.c.l.b16 %v1215
    %v1299 = vunpack.c.l.b16 %v1216
    %v1300 = vunpack.c.l.b16 %v1217
    %v1301 = vunpack.c.l.b16 %v1218
    %v1302 = vunpack.c.l.b16 %v1219
    %v1303 = vunpack.c.l.b16 %v1220
    %v1304 = vunpack.c.l.b16 %v1221
    %v1305 = vunpack.c.l.b16 %v1222
    %v1306 = vunpack.c.l.b16 %v1223
    %v1307 = vunpack.c.l.b16 %v1224
    %v1308 = vunpack.c.l.b16 %v1225
    %v1309 = vunpack.c.l.b16 %v1226
    %v1310 = vunpack.c.l.b16 %v1227
    %v1311 = vunpack.c.l.b16 %v1228
    %v1312 = vunpack.c.l.b16 %v1229
    %v1313 = vunpack.c.l.b16 %v1230
    %v1314 = vpack.c.b16 %v1275, %v1274
    %v1315 = vpack.c.b16 %v1277, %v1276
    %v1316 = vpack.c.b16 %v1279, %v1278
    %v1317 = vpack.c.b16 %v1281, %v1280
    %v1318 = vpack.c.b16 %v1283, %v1282
    %v1319 = vpack.c.b16 %v1285, %v1284
    %v1320 = vpack.c.b16 %v1287, %v1286
    %v1321 = vpack.c.b16 %v1289, %v1288
    %v1322 = vpack.c.b16 %v1291, %v1290
    %v1323 = vpack.c.b16 %v1293, %v1292
    %v1324 = vpack.c.b16 %v1295, %v1294
    %v1325 = vpack.c.b16 %v1297, %v1296
    %v1326 = vpack.c.b16 %v1299, %v1298
    %v1327 = vpack.c.b16 %v1301, %v1300
    %v1328 = vpack.c.b16 %v1303, %v1302
    %v1329 = vpack.c.b16 %v1305, %v1304
    %v1330 = vpack.c.b16 %v1307, %v1306
    %v1331 = vpack.c.b16 %v1309, %v1308
    %v1332 = vpack.c.b16 %v1311, %v1310
    %v1333 = vpack.c.b16 %v1313, %v1312
    %vm1354 = vcmask 523264
    %v1356 = vsel %vm1354, %v1233, 0
    %1358 = vmatpush.bf16.msra.mxu0 %v1321
    %1359 = vmatpush.bf16.msra.mxu0 %v1320
    %1360 = vmatpush.bf16.msra.mxu0 %v1319
    %1361 = vmatpush.bf16.msra.mxu0 %v1318
    %1362 = vmatpush.bf16.msra.mxu0 %v1317
    %1363 = vmatpush.bf16.msra.mxu0 %v1316
    %1364 = vmatpush.bf16.msra.mxu0 %v1315
    %1365 = vmatpush.bf16.msra.mxu0 %v1314
    %1366 = vmatmul.bf16.gmra.mxu0 %v1231
    %v1367 = vpop.f32.mrf.mxu0
    %v1368 = vadd.f32 %v28, %v1367
    %v1369 = vpop.f32.mrf.mxu0
    %1370 = vdwg.mxu0
    %1371 = vmatpush.bf16.msra.mxu0 %v1329
    %1372 = vmatpush.bf16.msra.mxu0 %v1328
    %1373 = vmatpush.bf16.msra.mxu0 %v1327
    %1374 = vmatpush.bf16.msra.mxu0 %v1326
    %1375 = vmatpush.bf16.msra.mxu0 %v1325
    %1376 = vmatpush.bf16.msra.mxu0 %v1324
    %1377 = vmatpush.bf16.msra.mxu0 %v1323
    %1378 = vmatpush.bf16.msra.mxu0 %v1322
    %1379 = vmatmul.bf16.gmra.mxu0 %v1232
    %v1380 = vpop.f32.mrf.mxu0
    %v1381 = vadd.f32 %v1368, %v1380
    %v1382 = vpop.f32.mrf.mxu0
    %1383 = vdwg.mxu0
    %1384 = vmatpush.bf16.msra.mxu0 0
    %1385 = vmatpush.bf16.msra.mxu0 0
    %1386 = vmatpush.bf16.msra.mxu0 0
    %1387 = vmatpush.bf16.msra.mxu0 0
    %1388 = vmatpush.bf16.msra.mxu0 %v1333
    %1389 = vmatpush.bf16.msra.mxu0 %v1332
    %1390 = vmatpush.bf16.msra.mxu0 %v1331
    %1391 = vmatpush.bf16.msra.mxu0 %v1330
    %1392 = vmatmul.bf16.gmra.mxu0 %v1356
    %v1393 = vpop.f32.mrf.mxu0
    %v1394 = vadd.f32 %v1381, %v1393
    %v1395 = vpop.f32.mrf.mxu0
    %1396 = vdwg.mxu0
    %v1397 = vmax.f32 %v1394, 0.0
    %v1398 = vld [vmem:[%s4 + $0xa0] sm:$0xf]
    %v1399 = vld [vmem:[%s4 + $0xa4] sm:$0xf]
    %v1400 = vld [vmem:[%s4 + $0xa8] sm:$0xf]
    %v1401 = vld [vmem:[%s4 + $0xac] sm:$0xf]
    %v1402 = vld [vmem:[%s4 + $0xb0] sm:$0xf]
    %v1403 = vld [vmem:[%s4 + $0xb4] sm:$0xf]
    %v1404 = vld [vmem:[%s4 + $0xb8] sm:$0xf]
    %v1405 = vld [vmem:[%s4 + $0xbc] sm:$0xf]
    %v1406 = vld [vmem:[%s4 + $0xc0] sm:$0xf]
    %v1407 = vld [vmem:[%s4 + $0xc4] sm:$0xf]
    %v1408 = vld [vmem:[%s4 + $0xc8] sm:$0xf]
    %v1409 = vld [vmem:[%s4 + $0xcc] sm:$0xf]
    %v1410 = vld [vmem:[%s4 + $0xd0] sm:$0xf]
    %v1411 = vld [vmem:[%s4 + $0xd4] sm:$0xf]
    %v1412 = vld [vmem:[%s4 + $0xd8] sm:$0xf]
    %v1413 = vld [vmem:[%s4 + $0xdc] sm:$0xf]
    %v1414 = vld [vmem:[%s4 + $0xe0] sm:$0xf]
    %v1415 = vld [vmem:[%s4 + $0xe4] sm:$0xf]
    %v1416 = vpack.c.bf16 %v1397, %v1397
    %1418 = vrot.lane.b32.xlu0 %v31, 96
    %v1419 = vpop.permute.xlu0 %1418
    %v1422 = vunpack.c.l.b16 %v1414
    %v1423 = vunpack.c.l.b16 %v1415
    %v1424 = vpack.c.b16 %v1423, %v1422
    %vm1426 = vcmask 130048
    %v1428 = vsel %vm1426, %v1419, 0
    %1430 = vmatpush.bf16.msra.mxu0 0
    %1431 = vmatpush.bf16.msra.mxu0 0
    %1432 = vmatpush.bf16.msra.mxu0 0
    %1433 = vmatpush.bf16.msra.mxu0 0
    %1434 = vmatpush.bf16.msra.mxu0 0
    %1435 = vmatpush.bf16.msra.mxu0 0
    %1436 = vmatpush.bf16.msra.mxu0 0
    %1437 = vmatpush.bf16.msra.mxu0 %v1424
    %1438 = vmatmul.bf16.gmra.mxu0 %v1428
    %v1439 = vpop.f32.mrf.mxu0
    %v1440 = vadd.f32 0.0, %v1439
    %v1441 = vpop.f32.mrf.mxu0
    %1442 = vdwg.mxu0
    %v1459 = vunpack.c.l.b16 %v1398
    %v1460 = vunpack.c.l.b16 %v1399
    %v1461 = vunpack.c.l.b16 %v1400
    %v1462 = vunpack.c.l.b16 %v1401
    %v1463 = vunpack.c.l.b16 %v1402
    %v1464 = vunpack.c.l.b16 %v1403
    %v1465 = vunpack.c.l.b16 %v1404
    %v1466 = vunpack.c.l.b16 %v1405
    %v1467 = vunpack.c.l.b16 %v1406
    %v1468 = vunpack.c.l.b16 %v1407
    %v1469 = vunpack.c.l.b16 %v1408
    %v1470 = vunpack.c.l.b16 %v1409
    %v1471 = vunpack.c.l.b16 %v1410
    %v1472 = vunpack.c.l.b16 %v1411
    %v1473 = vunpack.c.l.b16 %v1412
    %v1474 = vunpack.c.l.b16 %v1413
    %v1475 = vpack.c.b16 %v1460, %v1459
    %v1476 = vpack.c.b16 %v1462, %v1461
    %v1477 = vpack.c.b16 %v1464, %v1463
    %v1478 = vpack.c.b16 %v1466, %v1465
    %v1479 = vpack.c.b16 %v1468, %v1467
    %v1480 = vpack.c.b16 %v1470, %v1469
    %v1481 = vpack.c.b16 %v1472, %v1471
    %v1482 = vpack.c.b16 %v1474, %v1473
    %1491 = vmatpush.bf16.msra.mxu0 %v1482
    %1492 = vmatpush.bf16.msra.mxu0 %v1481
    %1493 = vmatpush.bf16.msra.mxu0 %v1480
    %1494 = vmatpush.bf16.msra.mxu0 %v1479
    %1495 = vmatpush.bf16.msra.mxu0 %v1478
    %1496 = vmatpush.bf16.msra.mxu0 %v1477
    %1497 = vmatpush.bf16.msra.mxu0 %v1476
    %1498 = vmatpush.bf16.msra.mxu0 %v1475
    %1499 = vmatmul.bf16.gmra.mxu0 %v1416
    %v1500 = vpop.f32.mrf.mxu0
    %v1501 = vadd.f32 %v1440, %v1500
    %v1502 = vpop.f32.mrf.mxu0
    %1503 = vdwg.mxu0
    %v1504 = vadd.f32 %v1501, %v29
    %v1505 = vmax.f32 %v1504, 0.0
    %v1506 = vld [vmem:[%s4 + $0xe8] sm:$0xf]
    %v1507 = vld [vmem:[%s4 + $0xec] sm:$0xf]
    %v1508 = vld [vmem:[%s4 + $0xf0] sm:$0xf]
    %v1509 = vld [vmem:[%s4 + $0xf4] sm:$0xf]
    %v1510 = vld [vmem:[%s4 + $0xf8] sm:$0xf]
    %v1511 = vld [vmem:[%s4 + $0xfc] sm:$0xf]
    %v1512 = vld [vmem:[%s4 + $0x100] sm:$0xf]
    %v1513 = vld [vmem:[%s4 + $0x104] sm:$0xf]
    %v1514 = vld [vmem:[%s4 + $0x108] sm:$0xf]
    %v1515 = vld [vmem:[%s4 + $0x10c] sm:$0xf]
    %v1516 = vld [vmem:[%s4 + $0x110] sm:$0xf]
    %v1517 = vld [vmem:[%s4 + $0x114] sm:$0xf]
    %v1518 = vld [vmem:[%s4 + $0x118] sm:$0xf]
    %v1519 = vld [vmem:[%s4 + $0x11c] sm:$0xf]
    %v1520 = vld [vmem:[%s4 + $0x120] sm:$0xf]
    %v1521 = vld [vmem:[%s4 + $0x124] sm:$0xf]
    %v1522 = vpack.c.bf16 %v1505, %v1505
    %v1539 = vunpack.c.l.b16 %v1506
    %v1540 = vunpack.c.l.b16 %v1507
    %v1541 = vunpack.c.l.b16 %v1508
    %v1542 = vunpack.c.l.b16 %v1509
    %v1543 = vunpack.c.l.b16 %v1510
    %v1544 = vunpack.c.l.b16 %v1511
    %v1545 = vunpack.c.l.b16 %v1512
    %v1546 = vunpack.c.l.b16 %v1513
    %v1547 = vunpack.c.l.b16 %v1514
    %v1548 = vunpack.c.l.b16 %v1515
    %v1549 = vunpack.c.l.b16 %v1516
    %v1550 = vunpack.c.l.b16 %v1517
    %v1551 = vunpack.c.l.b16 %v1518
    %v1552 = vunpack.c.l.b16 %v1519
    %v1553 = vunpack.c.l.b16 %v1520
    %v1554 = vunpack.c.l.b16 %v1521
    %v1555 = vpack.c.b16 %v1540, %v1539
    %v1556 = vpack.c.b16 %v1542, %v1541
    %v1557 = vpack.c.b16 %v1544, %v1543
    %v1558 = vpack.c.b16 %v1546, %v1545
    %v1559 = vpack.c.b16 %v1548, %v1547
    %v1560 = vpack.c.b16 %v1550, %v1549
    %v1561 = vpack.c.b16 %v1552, %v1551
    %v1562 = vpack.c.b16 %v1554, %v1553
    %1571 = vmatpush.bf16.msra.mxu0 %v1562
    %1572 = vmatpush.bf16.msra.mxu0 %v1561
    %1573 = vmatpush.bf16.msra.mxu0 %v1560
    %1574 = vmatpush.bf16.msra.mxu0 %v1559
    %1575 = vmatpush.bf16.msra.mxu0 %v1558
    %1576 = vmatpush.bf16.msra.mxu0 %v1557
    %1577 = vmatpush.bf16.msra.mxu0 %v1556
    %1578 = vmatpush.bf16.msra.mxu0 %v1555
    %1579 = vmatmul.bf16.gmra.mxu0 %v1522
    %v1580 = vpop.f32.mrf.mxu0
    %v1581 = vadd.f32 %v30, %v1580
    %v1582 = vpop.f32.mrf.mxu0
    %1583 = vdwg.mxu0
    %1584 = vst [vmem:[#allocation2] sm:$0x3] %v1581
    // Predicated region
    $region22: #{cnn_forward.1} parent=1 // pred_check
      _
    $region23: #{cnn_forward.1} parent=1 // pred_check_branch
      %1586 = sbr.rel (0) target = $region25
    $region24: #{cnn_forward.1} parent=1 // pred_region
      %1588 = vsyncadd [#allocation3], 0
      %s1590 = sshll.u32 [#allocation2], 4
      %s1591 = int_to_ptr.vmem [resolvable:$true] %s1590
      %s1592 = sshll.u32 %s5, 4
      %s1593 = int_to_ptr.hbm [resolvable:$true] %s1592
      %1595 = dma.vmem_to_hbm [thread:$0]  %s1591, 32, %s1593, [#allocation3]
    $region25: #{cnn_forward.1} parent=1 // pred_fallthru
      _
    // Predicated region
    $region26: #{cnn_forward.1} parent=1 // pred_check
      _
    $region27: #{cnn_forward.1} parent=1 // pred_check_branch
      %1597 = sbr.rel (0) target = $region29
    $region28: #{cnn_forward.1} parent=1 // pred_region
      %1599 = dma.done [#allocation3], 32
    $region29: #{cnn_forward.1} parent=1 // pred_fallthru
      _
    %1600 = vsyncpa [#allocation3], 1

</llo_original>
